<compile_context>
chip_gen: v7x
topology: tpu7x:2x2x1
jax: 0.10.0
libtpu: 0.0.40
codegen_flags: <defaults>
</compile_context>

<pallas_src>
import jax
import jax.numpy as jnp
from jax.experimental import pallas as pl
from jax.experimental.pallas import tpu as pltpu

HIDDEN = 10
LANES = 128


def mlp_kernel(params_ref, x_ref, o_ref):
    # params_ref (SMEM, f32[3*HIDDEN + 1]):
    #   [0:10]  w1_j (hidden weights), [10:20] b1_j (hidden biases),
    #   [20:30] w2_j (output weights), [30]    b2   (output bias)
    # x_ref / o_ref: (block_rows, 128) f32 tiles; batch is lane-dense.
    x = x_ref[...]
    acc = jnp.full_like(x, params_ref[3 * HIDDEN])          # broadcast b2
    # Unrolled over the 10 hidden units: pure VPU multiply/add/max, no MXU.
    for j in range(HIDDEN):
        h = jnp.maximum(x * params_ref[j] + params_ref[HIDDEN + j], 0.0)
        acc = acc + h * params_ref[2 * HIDDEN + j]
    o_ref[...] = acc


def neural_net_forward(x, w1, b1, w2, b2, *, block_rows=512):
    """x: [B, 1] f32. Params in PyTorch layout:
       w1 = hidden.weight [10, 1], b1 = hidden.bias [10],
       w2 = output.weight [1, 10], b2 = output.bias [1].
       Returns [B, 1] f32."""
    B = x.shape[0]

    # Pack all 31 parameters into one SMEM-resident vector (hidden-unit order).
    params = jnp.concatenate([
        jnp.reshape(w1, (-1,)).astype(jnp.float32),   # 10  w1_j
        jnp.reshape(b1, (-1,)).astype(jnp.float32),   # 10  b1_j
        jnp.reshape(w2, (-1,)).astype(jnp.float32),   # 10  w2_j
        jnp.reshape(b2, (-1,)).astype(jnp.float32),   # 1   b2
    ])

    # Lane-dense batch layout: pad B up to a whole number of
    # (block_rows, 128) tiles and view the batch as a 2-D slab.
    rows_needed = pl.cdiv(B, LANES)
    block_rows = min(block_rows, max(8, pl.cdiv(rows_needed, 8) * 8))
    tile_elems = block_rows * LANES
    B_pad = pl.cdiv(B, tile_elems) * tile_elems
    rows = B_pad // LANES

    x_flat = jnp.reshape(x.astype(jnp.float32), (B,))
    x2d = jnp.reshape(jnp.pad(x_flat, (0, B_pad - B)), (rows, LANES))

    out2d = pl.pallas_call(
        mlp_kernel,
        out_shape=jax.ShapeDtypeStruct((rows, LANES), jnp.float32),
        grid_spec=pltpu.PrefetchScalarGridSpec(
            num_scalar_prefetch=1,                  # params -> SMEM
            grid=(rows // block_rows,),
            in_specs=[pl.BlockSpec((block_rows, LANES), lambda i, p: (i, 0))],
            out_specs=pl.BlockSpec((block_rows, LANES), lambda i, p: (i, 0)),
        ),
        compiler_params=pltpu.CompilerParams(
            dimension_semantics=("parallel",),      # megacore / v7x 2-TC sharding
        ),
    )(params, x2d)

    return jnp.reshape(out2d, (B_pad, 1))[:B]


def reference_forward(x, w1, b1, w2, b2):
    h = jnp.maximum(x @ w1.T + b1, 0.0)
    return h @ w2.T + b2


if __name__ == "__main__":
    key = jax.random.PRNGKey(0)
    k_x, k_w1, k_b1, k_w2, k_b2 = jax.random.split(key, 5)

    # Small batch of scalar inputs (non-multiple of 128 to exercise padding).
    B = 300
    x = jax.random.normal(k_x, (B, 1), dtype=jnp.float32)

    # PyTorch-shaped parameters.
    w1 = jax.random.normal(k_w1, (10, 1), dtype=jnp.float32) * 0.5   # hidden.weight
    b1 = jax.random.normal(k_b1, (10,), dtype=jnp.float32) * 0.1     # hidden.bias
    w2 = jax.random.normal(k_w2, (1, 10), dtype=jnp.float32) * 0.5   # output.weight
    b2 = jax.random.normal(k_b2, (1,), dtype=jnp.float32) * 0.1      # output.bias

    out = neural_net_forward(x, w1, b1, w2, b2)
    out = jax.block_until_ready(out)

    ref = reference_forward(x, w1, b1, w2, b2)
    assert out.shape == (B, 1)
    assert jnp.allclose(out, ref, atol=1e-5, rtol=1e-4)

    print("KERNEL_OK")
</pallas_src>

<mosaic_0001>
module attributes {stable_mosaic.version = 11 : i64} {
  func.func @mlp_kernel(%arg0: i32, %arg1: memref<31xf32, #tpu.memory_space<smem>>, %arg2: memref<8x128xf32, #tpu.memory_space<vmem>>, %arg3: memref<8x128xf32, #tpu.memory_space<vmem>>) attributes {dimension_semantics = [#tpu.dimension_semantics<parallel>], iteration_bounds = array<i64: 1>, scalar_prefetch = 1 : i64, scratch_operands = 0 : i64, tpu.core_type = #tpu.core_type<tc>, window_params = [{transform_indices = @transform_0, window_bounds = array<i64: 8, 128>}, {transform_indices = @transform_1, window_bounds = array<i64: 8, 128>}]} {
    %c0 = arith.constant 0 : index
    %c0_0 = arith.constant 0 : index
    %0 = vector.load %arg2[%c0, %c0_0] : memref<8x128xf32, #tpu.memory_space<vmem>>, vector<8x128xf32>
    %c30 = arith.constant 30 : index
    %1 = memref.load %arg1[%c30] : memref<31xf32, #tpu.memory_space<smem>>
    %2 = vector.broadcast %1 : f32 to vector<8x128xf32>
    %c0_1 = arith.constant 0 : index
    %3 = memref.load %arg1[%c0_1] : memref<31xf32, #tpu.memory_space<smem>>
    %4 = vector.broadcast %3 : f32 to vector<8x128xf32>
    %5 = arith.mulf %0, %4 : vector<8x128xf32>
    %c10 = arith.constant 10 : index
    %6 = memref.load %arg1[%c10] : memref<31xf32, #tpu.memory_space<smem>>
    %7 = vector.broadcast %6 : f32 to vector<8x128xf32>
    %8 = arith.addf %5, %7 : vector<8x128xf32>
    %cst = arith.constant 0.000000e+00 : f32
    %9 = vector.broadcast %cst : f32 to vector<8x128xf32>
    %10 = arith.maximumf %8, %9 : vector<8x128xf32>
    %c20 = arith.constant 20 : index
    %11 = memref.load %arg1[%c20] : memref<31xf32, #tpu.memory_space<smem>>
    %12 = vector.broadcast %11 : f32 to vector<8x128xf32>
    %13 = arith.mulf %10, %12 : vector<8x128xf32>
    %14 = arith.addf %2, %13 : vector<8x128xf32>
    %c1 = arith.constant 1 : index
    %15 = memref.load %arg1[%c1] : memref<31xf32, #tpu.memory_space<smem>>
    %16 = vector.broadcast %15 : f32 to vector<8x128xf32>
    %17 = arith.mulf %0, %16 : vector<8x128xf32>
    %c11 = arith.constant 11 : index
    %18 = memref.load %arg1[%c11] : memref<31xf32, #tpu.memory_space<smem>>
    %19 = vector.broadcast %18 : f32 to vector<8x128xf32>
    %20 = arith.addf %17, %19 : vector<8x128xf32>
    %cst_2 = arith.constant 0.000000e+00 : f32
    %21 = vector.broadcast %cst_2 : f32 to vector<8x128xf32>
    %22 = arith.maximumf %20, %21 : vector<8x128xf32>
    %c21 = arith.constant 21 : index
    %23 = memref.load %arg1[%c21] : memref<31xf32, #tpu.memory_space<smem>>
    %24 = vector.broadcast %23 : f32 to vector<8x128xf32>
    %25 = arith.mulf %22, %24 : vector<8x128xf32>
    %26 = arith.addf %14, %25 : vector<8x128xf32>
    %c2 = arith.constant 2 : index
    %27 = memref.load %arg1[%c2] : memref<31xf32, #tpu.memory_space<smem>>
    %28 = vector.broadcast %27 : f32 to vector<8x128xf32>
    %29 = arith.mulf %0, %28 : vector<8x128xf32>
    %c12 = arith.constant 12 : index
    %30 = memref.load %arg1[%c12] : memref<31xf32, #tpu.memory_space<smem>>
    %31 = vector.broadcast %30 : f32 to vector<8x128xf32>
    %32 = arith.addf %29, %31 : vector<8x128xf32>
    %cst_3 = arith.constant 0.000000e+00 : f32
    %33 = vector.broadcast %cst_3 : f32 to vector<8x128xf32>
    %34 = arith.maximumf %32, %33 : vector<8x128xf32>
    %c22 = arith.constant 22 : index
    %35 = memref.load %arg1[%c22] : memref<31xf32, #tpu.memory_space<smem>>
    %36 = vector.broadcast %35 : f32 to vector<8x128xf32>
    %37 = arith.mulf %34, %36 : vector<8x128xf32>
    %38 = arith.addf %26, %37 : vector<8x128xf32>
    %c3 = arith.constant 3 : index
    %39 = memref.load %arg1[%c3] : memref<31xf32, #tpu.memory_space<smem>>
    %40 = vector.broadcast %39 : f32 to vector<8x128xf32>
    %41 = arith.mulf %0, %40 : vector<8x128xf32>
    %c13 = arith.constant 13 : index
    %42 = memref.load %arg1[%c13] : memref<31xf32, #tpu.memory_space<smem>>
    %43 = vector.broadcast %42 : f32 to vector<8x128xf32>
    %44 = arith.addf %41, %43 : vector<8x128xf32>
    %cst_4 = arith.constant 0.000000e+00 : f32
    %45 = vector.broadcast %cst_4 : f32 to vector<8x128xf32>
    %46 = arith.maximumf %44, %45 : vector<8x128xf32>
    %c23 = arith.constant 23 : index
    %47 = memref.load %arg1[%c23] : memref<31xf32, #tpu.memory_space<smem>>
    %48 = vector.broadcast %47 : f32 to vector<8x128xf32>
    %49 = arith.mulf %46, %48 : vector<8x128xf32>
    %50 = arith.addf %38, %49 : vector<8x128xf32>
    %c4 = arith.constant 4 : index
    %51 = memref.load %arg1[%c4] : memref<31xf32, #tpu.memory_space<smem>>
    %52 = vector.broadcast %51 : f32 to vector<8x128xf32>
    %53 = arith.mulf %0, %52 : vector<8x128xf32>
    %c14 = arith.constant 14 : index
    %54 = memref.load %arg1[%c14] : memref<31xf32, #tpu.memory_space<smem>>
    %55 = vector.broadcast %54 : f32 to vector<8x128xf32>
    %56 = arith.addf %53, %55 : vector<8x128xf32>
    %cst_5 = arith.constant 0.000000e+00 : f32
    %57 = vector.broadcast %cst_5 : f32 to vector<8x128xf32>
    %58 = arith.maximumf %56, %57 : vector<8x128xf32>
    %c24 = arith.constant 24 : index
    %59 = memref.load %arg1[%c24] : memref<31xf32, #tpu.memory_space<smem>>
    %60 = vector.broadcast %59 : f32 to vector<8x128xf32>
    %61 = arith.mulf %58, %60 : vector<8x128xf32>
    %62 = arith.addf %50, %61 : vector<8x128xf32>
    %c5 = arith.constant 5 : index
    %63 = memref.load %arg1[%c5] : memref<31xf32, #tpu.memory_space<smem>>
    %64 = vector.broadcast %63 : f32 to vector<8x128xf32>
    %65 = arith.mulf %0, %64 : vector<8x128xf32>
    %c15 = arith.constant 15 : index
    %66 = memref.load %arg1[%c15] : memref<31xf32, #tpu.memory_space<smem>>
    %67 = vector.broadcast %66 : f32 to vector<8x128xf32>
    %68 = arith.addf %65, %67 : vector<8x128xf32>
    %cst_6 = arith.constant 0.000000e+00 : f32
    %69 = vector.broadcast %cst_6 : f32 to vector<8x128xf32>
    %70 = arith.maximumf %68, %69 : vector<8x128xf32>
    %c25 = arith.constant 25 : index
    %71 = memref.load %arg1[%c25] : memref<31xf32, #tpu.memory_space<smem>>
    %72 = vector.broadcast %71 : f32 to vector<8x128xf32>
    %73 = arith.mulf %70, %72 : vector<8x128xf32>
    %74 = arith.addf %62, %73 : vector<8x128xf32>
    %c6 = arith.constant 6 : index
    %75 = memref.load %arg1[%c6] : memref<31xf32, #tpu.memory_space<smem>>
    %76 = vector.broadcast %75 : f32 to vector<8x128xf32>
    %77 = arith.mulf %0, %76 : vector<8x128xf32>
    %c16 = arith.constant 16 : index
    %78 = memref.load %arg1[%c16] : memref<31xf32, #tpu.memory_space<smem>>
    %79 = vector.broadcast %78 : f32 to vector<8x128xf32>
    %80 = arith.addf %77, %79 : vector<8x128xf32>
    %cst_7 = arith.constant 0.000000e+00 : f32
    %81 = vector.broadcast %cst_7 : f32 to vector<8x128xf32>
    %82 = arith.maximumf %80, %81 : vector<8x128xf32>
    %c26 = arith.constant 26 : index
    %83 = memref.load %arg1[%c26] : memref<31xf32, #tpu.memory_space<smem>>
    %84 = vector.broadcast %83 : f32 to vector<8x128xf32>
    %85 = arith.mulf %82, %84 : vector<8x128xf32>
    %86 = arith.addf %74, %85 : vector<8x128xf32>
    %c7 = arith.constant 7 : index
    %87 = memref.load %arg1[%c7] : memref<31xf32, #tpu.memory_space<smem>>
    %88 = vector.broadcast %87 : f32 to vector<8x128xf32>
    %89 = arith.mulf %0, %88 : vector<8x128xf32>
    %c17 = arith.constant 17 : index
    %90 = memref.load %arg1[%c17] : memref<31xf32, #tpu.memory_space<smem>>
    %91 = vector.broadcast %90 : f32 to vector<8x128xf32>
    %92 = arith.addf %89, %91 : vector<8x128xf32>
    %cst_8 = arith.constant 0.000000e+00 : f32
    %93 = vector.broadcast %cst_8 : f32 to vector<8x128xf32>
    %94 = arith.maximumf %92, %93 : vector<8x128xf32>
    %c27 = arith.constant 27 : index
    %95 = memref.load %arg1[%c27] : memref<31xf32, #tpu.memory_space<smem>>
    %96 = vector.broadcast %95 : f32 to vector<8x128xf32>
    %97 = arith.mulf %94, %96 : vector<8x128xf32>
    %98 = arith.addf %86, %97 : vector<8x128xf32>
    %c8 = arith.constant 8 : index
    %99 = memref.load %arg1[%c8] : memref<31xf32, #tpu.memory_space<smem>>
    %100 = vector.broadcast %99 : f32 to vector<8x128xf32>
    %101 = arith.mulf %0, %100 : vector<8x128xf32>
    %c18 = arith.constant 18 : index
    %102 = memref.load %arg1[%c18] : memref<31xf32, #tpu.memory_space<smem>>
    %103 = vector.broadcast %102 : f32 to vector<8x128xf32>
    %104 = arith.addf %101, %103 : vector<8x128xf32>
    %cst_9 = arith.constant 0.000000e+00 : f32
    %105 = vector.broadcast %cst_9 : f32 to vector<8x128xf32>
    %106 = arith.maximumf %104, %105 : vector<8x128xf32>
    %c28 = arith.constant 28 : index
    %107 = memref.load %arg1[%c28] : memref<31xf32, #tpu.memory_space<smem>>
    %108 = vector.broadcast %107 : f32 to vector<8x128xf32>
    %109 = arith.mulf %106, %108 : vector<8x128xf32>
    %110 = arith.addf %98, %109 : vector<8x128xf32>
    %c9 = arith.constant 9 : index
    %111 = memref.load %arg1[%c9] : memref<31xf32, #tpu.memory_space<smem>>
    %112 = vector.broadcast %111 : f32 to vector<8x128xf32>
    %113 = arith.mulf %0, %112 : vector<8x128xf32>
    %c19 = arith.constant 19 : index
    %114 = memref.load %arg1[%c19] : memref<31xf32, #tpu.memory_space<smem>>
    %115 = vector.broadcast %114 : f32 to vector<8x128xf32>
    %116 = arith.addf %113, %115 : vector<8x128xf32>
    %cst_10 = arith.constant 0.000000e+00 : f32
    %117 = vector.broadcast %cst_10 : f32 to vector<8x128xf32>
    %118 = arith.maximumf %116, %117 : vector<8x128xf32>
    %c29 = arith.constant 29 : index
    %119 = memref.load %arg1[%c29] : memref<31xf32, #tpu.memory_space<smem>>
    %120 = vector.broadcast %119 : f32 to vector<8x128xf32>
    %121 = arith.mulf %118, %120 : vector<8x128xf32>
    %122 = arith.addf %110, %121 : vector<8x128xf32>
    %c0_11 = arith.constant 0 : index
    %c0_12 = arith.constant 0 : index
    %123 = vector.load %arg3[%c0_11, %c0_12] : memref<8x128xf32, #tpu.memory_space<vmem>>, vector<8x128xf32>
    tpu.vector_store %arg3[%c0_11, %c0_12], %122 {strides = array<i32>} : memref<8x128xf32, #tpu.memory_space<vmem>>, vector<8x128xf32>,
    return
  }
  func.func @transform_0(%arg0: i32, %arg1: memref<31xf32, #tpu.memory_space<smem>>) -> (i32, i32) {
    %c0_i32 = arith.constant 0 : i32
    %c0_i32_0 = arith.constant 0 : i32
    return %arg0, %c0_i32 : i32, i32
  }
  func.func @transform_1(%arg0: i32, %arg1: memref<31xf32, #tpu.memory_space<smem>>) -> (i32, i32) {
    %c0_i32 = arith.constant 0 : i32
    %c0_i32_0 = arith.constant 0 : i32
    return %arg0, %c0_i32 : i32, i32
  }
}

</mosaic_0001>

<llo_original>
// kernel: tpu_custom_call.1
$region0: #{tpu_custom_call.1}
  #allocation0 [shape = 'u32[]', space=smem, size = 0x4, offset = 0x4, fixed_abs, tag = 'smem constant byte address 0x4 - core index']
  #allocation1 [shape = 'u32[144,128]{1,0:T(1,128)}', space=vmem, size = 0x12000, scoped, tag = 'internal scratch']
  #allocation2 [shape = 's32[1]{0}', space=sflag, size = 0x4, scoped, tag = 'scoped memory for tpu_custom_call.1']
  #allocation3 [shape = 'u8[512]{0}', space=smem, size = 0x200, scoped, tag = 'prefetched SMEM operand 0']
  %s0 = inlined_call_operand.hbm [shape: f32[31], index: 0, kind: input, shape index: {}]
  %s1 = inlined_call_operand.hbm [shape: f32[8,128], index: 1, kind: input, shape index: {}]
  %s2 = inlined_call_operand.hbm [shape: f32[8,128], index: 2, kind: output, shape index: {}]
  %s3 = sld [smem:[#allocation0]]
  $region18: #{tpu_custom_call.1} parent=0
    _
  %s5 = ssub.s32 1, %s3
  %s6 = scalar_select 0, %s5, %s3
  %8 = dma.hbm_to_smem %s0, 16, [#allocation3], [#allocation2]
  %9 = dma.done [#allocation2], 16
  %10 = sfence
  $region1: #{tpu_custom_call.1} parent=0
    #allocation4 [shape = 'u8[4096]{0}', space=vmem, size = 0x1000, scoped, tag = 'input window, operand 1, single buffered']
    #allocation5 [shape = 's32[1]{0}', space=sflag, size = 0x4, scoped, tag = 'scoped memory for tpu_custom_call.1']
    #allocation6 [shape = 's32[1]{0}', space=sflag, size = 0x4, scoped, tag = 'scoped memory for tpu_custom_call.1']
    #allocation7 [shape = 'u8[4096]{0}', space=vmem, size = 0x1000, scoped, tag = 'output window, operand 0, single buffered']
    %11 = vsyncpa [#allocation5], 0
    %12 = vsyncpa [#allocation6], 0
    // Predicated region
    $region2: #{tpu_custom_call.1} parent=1 // pred_check
      _
    $region3: #{tpu_custom_call.1} parent=1 // pred_check_branch
      %14 = sbr.rel (0) target = $region5
    $region4: #{tpu_custom_call.1} parent=1 // pred_region
      %s16 = ssub.s32 128, 128
      %17 = vsyncadd [#allocation5], %s16
      %s19 = sshll.u32 [#allocation4], 4
      %s20 = int_to_ptr.vmem [resolvable:$true] %s19
      %22 = dma.hbm_to_vmem [thread:$0]  %s1, 128, %s20, [#allocation5]
    $region5: #{tpu_custom_call.1} parent=1 // pred_fallthru
      _
    // Predicated region
    $region6: #{tpu_custom_call.1} parent=1 // pred_check
      _
    $region7: #{tpu_custom_call.1} parent=1 // pred_check_branch
      %24 = sbr.rel (0) target = $region9
    $region8: #{tpu_custom_call.1} parent=1 // pred_region
      %25 = dma.done [#allocation5], 128
    $region9: #{tpu_custom_call.1} parent=1 // pred_fallthru
      _
    %v26 = vld [vmem:[#allocation4] sm:$0xff]
    %s27 = sld [smem:[#allocation3 + $0x1e]]
    %v28 = vstv %s27
    %s29 = sld [smem:[#allocation3]]
    %v30 = vstv %s29
    %v31 = vmul.f32 %v26, %v30
    %s32 = sld [smem:[#allocation3 + $0xa]]
    %v33 = vstv %s32
    %v34 = vadd.f32 %v31, %v33
    %v35 = vmax.f32 %v34, 0.0
    %s36 = sld [smem:[#allocation3 + $0x14]]
    %v37 = vstv %s36
    %v38 = vmul.f32 %v35, %v37
    %v39 = vadd.f32 %v28, %v38
    %s40 = sld [smem:[#allocation3 + $0x1]]
    %v41 = vstv %s40
    %v42 = vmul.f32 %v26, %v41
    %s43 = sld [smem:[#allocation3 + $0xb]]
    %v44 = vstv %s43
    %v45 = vadd.f32 %v42, %v44
    %v46 = vmax.f32 %v45, 0.0
    %s47 = sld [smem:[#allocation3 + $0x15]]
    %v48 = vstv %s47
    %v49 = vmul.f32 %v46, %v48
    %v50 = vadd.f32 %v39, %v49
    %s51 = sld [smem:[#allocation3 + $0x2]]
    %v52 = vstv %s51
    %v53 = vmul.f32 %v26, %v52
    %s54 = sld [smem:[#allocation3 + $0xc]]
    %v55 = vstv %s54
    %v56 = vadd.f32 %v53, %v55
    %v57 = vmax.f32 %v56, 0.0
    %s58 = sld [smem:[#allocation3 + $0x16]]
    %v59 = vstv %s58
    %v60 = vmul.f32 %v57, %v59
    %v61 = vadd.f32 %v50, %v60
    %s62 = sld [smem:[#allocation3 + $0x3]]
    %v63 = vstv %s62
    %v64 = vmul.f32 %v26, %v63
    %s65 = sld [smem:[#allocation3 + $0xd]]
    %v66 = vstv %s65
    %v67 = vadd.f32 %v64, %v66
    %v68 = vmax.f32 %v67, 0.0
    %s69 = sld [smem:[#allocation3 + $0x17]]
    %v70 = vstv %s69
    %v71 = vmul.f32 %v68, %v70
    %v72 = vadd.f32 %v61, %v71
    %s73 = sld [smem:[#allocation3 + $0x4]]
    %v74 = vstv %s73
    %v75 = vmul.f32 %v26, %v74
    %s76 = sld [smem:[#allocation3 + $0xe]]
    %v77 = vstv %s76
    %v78 = vadd.f32 %v75, %v77
    %v79 = vmax.f32 %v78, 0.0
    %s80 = sld [smem:[#allocation3 + $0x18]]
    %v81 = vstv %s80
    %v82 = vmul.f32 %v79, %v81
    %v83 = vadd.f32 %v72, %v82
    %s84 = sld [smem:[#allocation3 + $0x5]]
    %v85 = vstv %s84
    %v86 = vmul.f32 %v26, %v85
    %s87 = sld [smem:[#allocation3 + $0xf]]
    %v88 = vstv %s87
    %v89 = vadd.f32 %v86, %v88
    %v90 = vmax.f32 %v89, 0.0
    %s91 = sld [smem:[#allocation3 + $0x19]]
    %v92 = vstv %s91
    %v93 = vmul.f32 %v90, %v92
    %v94 = vadd.f32 %v83, %v93
    %s95 = sld [smem:[#allocation3 + $0x6]]
    %v96 = vstv %s95
    %v97 = vmul.f32 %v26, %v96
    %s98 = sld [smem:[#allocation3 + $0x10]]
    %v99 = vstv %s98
    %v100 = vadd.f32 %v97, %v99
    %v101 = vmax.f32 %v100, 0.0
    %s102 = sld [smem:[#allocation3 + $0x1a]]
    %v103 = vstv %s102
    %v104 = vmul.f32 %v101, %v103
    %v105 = vadd.f32 %v94, %v104
    %s106 = sld [smem:[#allocation3 + $0x7]]
    %v107 = vstv %s106
    %v108 = vmul.f32 %v26, %v107
    %s109 = sld [smem:[#allocation3 + $0x11]]
    %v110 = vstv %s109
    %v111 = vadd.f32 %v108, %v110
    %v112 = vmax.f32 %v111, 0.0
    %s113 = sld [smem:[#allocation3 + $0x1b]]
    %v114 = vstv %s113
    %v115 = vmul.f32 %v112, %v114
    %v116 = vadd.f32 %v105, %v115
    %s117 = sld [smem:[#allocation3 + $0x8]]
    %v118 = vstv %s117
    %v119 = vmul.f32 %v26, %v118
    %s120 = sld [smem:[#allocation3 + $0x12]]
    %v121 = vstv %s120
    %v122 = vadd.f32 %v119, %v121
    %v123 = vmax.f32 %v122, 0.0
    %s124 = sld [smem:[#allocation3 + $0x1c]]
    %v125 = vstv %s124
    %v126 = vmul.f32 %v123, %v125
    %v127 = vadd.f32 %v116, %v126
    %s128 = sld [smem:[#allocation3 + $0x9]]
    %v129 = vstv %s128
    %v130 = vmul.f32 %v26, %v129
    %s131 = sld [smem:[#allocation3 + $0x13]]
    %v132 = vstv %s131
    %v133 = vadd.f32 %v130, %v132
    %v134 = vmax.f32 %v133, 0.0
    %s135 = sld [smem:[#allocation3 + $0x1d]]
    %v136 = vstv %s135
    %v137 = vmul.f32 %v134, %v136
    %v138 = vadd.f32 %v127, %v137
    %139 = vst [vmem:[#allocation7] sm:$0xff] %v138
    // Predicated region
    $region10: #{tpu_custom_call.1} parent=1 // pred_check
      _
    $region11: #{tpu_custom_call.1} parent=1 // pred_check_branch
      %141 = sbr.rel (0) target = $region13
    $region12: #{tpu_custom_call.1} parent=1 // pred_region
      %s143 = ssub.s32 128, 128
      %144 = vsyncadd [#allocation6], %s143
      %s146 = sshll.u32 [#allocation7], 4
      %s147 = int_to_ptr.vmem [resolvable:$true] %s146
      %149 = dma.vmem_to_hbm [thread:$0]  %s147, 128, %s2, [#allocation6]
    $region13: #{tpu_custom_call.1} parent=1 // pred_fallthru
      _
    // Predicated region
    $region14: #{tpu_custom_call.1} parent=1 // pred_check
      _
    $region15: #{tpu_custom_call.1} parent=1 // pred_check_branch
      %151 = sbr.rel (0) target = $region17
    $region16: #{tpu_custom_call.1} parent=1 // pred_region
      %152 = dma.done [#allocation6], 128
    $region17: #{tpu_custom_call.1} parent=1 // pred_fallthru
      _
    %153 = vsyncpa [#allocation5], 1
    %154 = vsyncpa [#allocation6], 1

</llo_original>
